<compile_context>
chip_gen: v7x
topology: tpu7x:2x2x1
jax: 0.10.0
libtpu: 0.0.40
codegen_flags: <defaults>
</compile_context>

<pallas_src>
import functools

import jax
import jax.numpy as jnp
from jax.experimental import pallas as pl
from jax.experimental.pallas import tpu as pltpu


_LANE = 128                                     # vreg lane width
_SUBLANE_BY_ITEMSIZE = {4: 8, 2: 16, 1: 32}     # sublane packing per dtype size
# Total VMEM spent on the double-buffered input + output blocks.  24 MiB is
# past the measured ~85% HBM-roofline plateau for tiled elementwise kernels
# and leaves ample headroom on v7x (64 MiB physical VMEM).
_BLOCK_VMEM_BUDGET = 24 * 1024 * 1024
_VMEM_LIMIT_BYTES = 40 * 1024 * 1024            # > default scoped limit, < v7x physical
_MAX_ROW_TILE = 1024                            # per-step overhead fully amortized here


def _round_up(x, m):
    return (x + m - 1) // m * m


def _rmsnorm_kernel(x_ref, w_ref, o_ref, *, eps, inv_hidden):
    # x_ref: (tm, Hp) block, w_ref: (1, Hp) weight, o_ref: (tm, Hp).
    x = x_ref[...].astype(jnp.float32)                       # .to(torch.float32)
    # sum * (1/H_true): zero-padded hidden columns contribute nothing.
    variance = jnp.sum(x * x, axis=-1, keepdims=True) * inv_hidden
    normed = x * jax.lax.rsqrt(variance + eps)               # * rsqrt(var + eps)
    # PyTorch: weight (f32) * hidden_states.to(input_dtype).  The round trip
    # through the input dtype is intentional for bit-exactness with BitRMSNorm.
    casted = normed.astype(x_ref.dtype)
    o_ref[...] = (w_ref[...].astype(jnp.float32)
                  * casted.astype(jnp.float32)).astype(o_ref.dtype)


def _choose_row_tile(rows, hidden_padded, in_dtype, out_dtype):
    """Largest sublane-aligned row tile whose double-buffered blocks fit budget."""
    sublane = _SUBLANE_BY_ITEMSIZE.get(jnp.dtype(in_dtype).itemsize, 8)
    in_b = jnp.dtype(in_dtype).itemsize
    out_b = jnp.dtype(out_dtype).itemsize
    bytes_per_row = hidden_padded * 2 * (in_b + out_b)       # 2x = double buffering
    tm = _BLOCK_VMEM_BUDGET // max(bytes_per_row, 1)
    tm = max(sublane, (tm // sublane) * sublane)             # sublane-packed rows
    tm = min(tm, _MAX_ROW_TILE)                              # keep grid length >= 2 on big inputs
    tm = min(tm, _round_up(rows, sublane))                   # no point exceeding row count
    return int(tm)


def bit_rms_norm(hidden_states, weight, eps=1e-6, *, out_dtype=None, row_tile=None):
    """RMSNorm over the last axis.  Matches BitRMSNorm.forward semantics.

    out_dtype defaults to the PyTorch promotion (f32 weight * input dtype -> f32);
    pass out_dtype=hidden_states.dtype to halve writeback if the consumer accepts it.
    """
    orig_shape = hidden_states.shape
    hidden = orig_shape[-1]
    rows = 1
    for d in orig_shape[:-1]:
        rows *= d

    in_dtype = hidden_states.dtype
    if out_dtype is None:
        out_dtype = jnp.promote_types(weight.dtype, in_dtype)

    # Pad hidden to a lane multiple so every store is an unmasked, lane-dense vst.
    hidden_p = _round_up(hidden, _LANE)
    x2d = hidden_states.reshape(rows, hidden)
    w2d = weight.reshape(1, hidden)
    if hidden_p != hidden:
        pad = hidden_p - hidden
        x2d = jnp.pad(x2d, ((0, 0), (0, pad)))
        w2d = jnp.pad(w2d, ((0, 0), (0, pad)))

    tm = row_tile if row_tile is not None else _choose_row_tile(
        rows, hidden_p, in_dtype, out_dtype)
    grid = (pl.cdiv(rows, tm),)   # non-divisible tails: OOB reads masked, OOB writes dropped

    in_b = jnp.dtype(in_dtype).itemsize
    out_b = jnp.dtype(out_dtype).itemsize
    w_b = jnp.dtype(weight.dtype).itemsize
    cost = pl.CostEstimate(
        flops=4 * rows * hidden,
        transcendentals=rows,
        bytes_accessed=rows * hidden * (in_b + out_b) + hidden * w_b,
    )

    out2d = pl.pallas_call(
        functools.partial(_rmsnorm_kernel, eps=eps, inv_hidden=1.0 / hidden),
        out_shape=jax.ShapeDtypeStruct((rows, hidden_p), out_dtype),
        grid_spec=pltpu.PrefetchScalarGridSpec(
            num_scalar_prefetch=0,
            grid=grid,
            in_specs=[
                pl.BlockSpec((tm, hidden_p), lambda i: (i, 0)),
                pl.BlockSpec((1, hidden_p), lambda i: (0, 0)),
            ],
            out_specs=pl.BlockSpec((tm, hidden_p), lambda i: (i, 0)),
        ),
        compiler_params=pltpu.CompilerParams(
            dimension_semantics=("parallel",),
            vmem_limit_bytes=_VMEM_LIMIT_BYTES,
        ),
        cost_estimate=cost,
    )(x2d, w2d)

    if hidden_p != hidden:
        out2d = out2d[:, :hidden]
    return out2d.reshape(orig_shape[:-1] + (hidden,))


def _reference(hidden_states, weight, eps=1e-6):
    x = hidden_states.astype(jnp.float32)
    var = jnp.mean(x * x, axis=-1, keepdims=True)
    x = x * jax.lax.rsqrt(var + eps)
    return weight * x.astype(hidden_states.dtype)


if __name__ == "__main__":
    key = jax.random.PRNGKey(0)

    # Primary test: matches nn.Parameter(torch.ones(hidden_size)) init, f32 input.
    batch, seq, hidden = 2, 8, 32
    x = jax.random.normal(key, (batch, seq, hidden), dtype=jnp.float32)
    weight = jnp.ones((hidden,), dtype=jnp.float32)

    out = bit_rms_norm(x, weight, eps=1e-6)
    jax.block_until_ready(out)

    ref = _reference(x, weight, eps=1e-6)
    assert out.shape == ref.shape and out.dtype == ref.dtype
    assert jnp.allclose(out, ref, atol=1e-5, rtol=1e-5)

    # Secondary test: bf16 input, rows not divisible by the tile (exercises the
    # cdiv tail masking and hidden-lane padding paths).
    k2 = jax.random.PRNGKey(0)
    x2 = jax.random.normal(k2, (3, 5, hidden), dtype=jnp.bfloat16)
    out2 = bit_rms_norm(x2, weight, eps=1e-6)
    jax.block_until_ready(out2)
    ref2 = _reference(x2, weight, eps=1e-6)
    assert out2.shape == ref2.shape and out2.dtype == ref2.dtype
    assert jnp.allclose(out2, ref2, atol=2e-2, rtol=2e-2)

    print("KERNEL_OK")
</pallas_src>

<mosaic_0001>
module attributes {stable_mosaic.version = 11 : i64} {
  func.func @_rmsnorm_kernel(%arg0: i32, %arg1: memref<16x128xf32, #tpu.memory_space<vmem>>, %arg2: memref<1x128xf32, #tpu.memory_space<vmem>>, %arg3: memref<16x128xf32, #tpu.memory_space<vmem>>) attributes {dimension_semantics = [#tpu.dimension_semantics<parallel>], iteration_bounds = array<i64: 1>, scalar_prefetch = 0 : i64, scratch_operands = 0 : i64, tpu.core_type = #tpu.core_type<tc>, window_params = [{transform_indices = @transform_0, window_bounds = array<i64: 16, 128>}, {pipeline_mode = #tpu.pipeline_mode<synchronous>, transform_indices = @transform_1, window_bounds = array<i64: 1, 128>}, {transform_indices = @transform_2, window_bounds = array<i64: 16, 128>}]} {
    %c0 = arith.constant 0 : index
    %c0_0 = arith.constant 0 : index
    %0 = vector.load %arg1[%c0, %c0_0] : memref<16x128xf32, #tpu.memory_space<vmem>>, vector<16x128xf32>
    %1 = arith.mulf %0, %0 : vector<16x128xf32>
    %cst = arith.constant dense<0.000000e+00> : vector<16xf32>
    %2 = vector.multi_reduction <add>, %1, %cst [1] : vector<16x128xf32> to vector<16xf32>
    %3 = vector.shape_cast %2 : vector<16xf32> to vector<16x1xf32>
    %cst_1 = arith.constant 3.125000e-02 : f32
    %4 = vector.broadcast %cst_1 : f32 to vector<16x1xf32>
    %5 = arith.mulf %3, %4 : vector<16x1xf32>
    %cst_2 = arith.constant 9.99999997E-7 : f32
    %6 = vector.broadcast %cst_2 : f32 to vector<16x1xf32>
    %7 = arith.addf %5, %6 : vector<16x1xf32>
    %8 = math.rsqrt %7 : vector<16x1xf32>
    %9 = vector.broadcast %8 : vector<16x1xf32> to vector<16x128xf32>
    %10 = arith.mulf %0, %9 : vector<16x128xf32>
    %c0_3 = arith.constant 0 : index
    %c0_4 = arith.constant 0 : index
    %11 = vector.load %arg2[%c0_3, %c0_4] : memref<1x128xf32, #tpu.memory_space<vmem>>, vector<1x128xf32>
    %12 = vector.broadcast %11 : vector<1x128xf32> to vector<16x128xf32>
    %13 = arith.mulf %12, %10 : vector<16x128xf32>
    %c0_5 = arith.constant 0 : index
    %c0_6 = arith.constant 0 : index
    %14 = vector.load %arg3[%c0_5, %c0_6] : memref<16x128xf32, #tpu.memory_space<vmem>>, vector<16x128xf32>
    tpu.vector_store %arg3[%c0_5, %c0_6], %13 {strides = array<i32>} : memref<16x128xf32, #tpu.memory_space<vmem>>, vector<16x128xf32>,
    return
  }
  func.func @transform_0(%arg0: i32) -> (i32, i32) {
    %c0_i32 = arith.constant 0 : i32
    %c0_i32_0 = arith.constant 0 : i32
    return %arg0, %c0_i32 : i32, i32
  }
  func.func @transform_1(%arg0: i32) -> (i32, i32) {
    %c0_i32 = arith.constant 0 : i32
    %c0_i32_0 = arith.constant 0 : i32
    %c0_i32_1 = arith.constant 0 : i32
    return %c0_i32, %c0_i32_0 : i32, i32
  }
  func.func @transform_2(%arg0: i32) -> (i32, i32) {
    %c0_i32 = arith.constant 0 : i32
    %c0_i32_0 = arith.constant 0 : i32
    return %arg0, %c0_i32 : i32, i32
  }
}

</mosaic_0001>

<llo_original>
// kernel: tpu_custom_call.1
$region0: #{tpu_custom_call.1}
  #allocation0 [shape = 'u32[]', space=smem, size = 0x4, offset = 0x4, fixed_abs, tag = 'smem constant byte address 0x4 - core index']
  #allocation1 [shape = 'u32[144,128]{1,0:T(1,128)}', space=vmem, size = 0x12000, scoped, tag = 'internal scratch']
  %s0 = inlined_call_operand.hbm [shape: f32[16,128], index: 0, kind: input, shape index: {}]
  %s1 = inlined_call_operand.vmem [shape: f32[1,128], index: 1, kind: input, shape index: {}]
  %s2 = inlined_call_operand.hbm [shape: f32[16,128], index: 2, kind: output, shape index: {}]
  %s3 = sld [smem:[#allocation0]]
  $region22: #{tpu_custom_call.1} parent=0
    _
  %s5 = ssub.s32 1, %s3
  %s6 = scalar_select 0, %s5, %s3
  $region1: #{tpu_custom_call.1} parent=0
    #allocation2 [shape = 'u8[8192]{0}', space=vmem, size = 0x2000, scoped, tag = 'input window, operand 0, single buffered']
    #allocation3 [shape = 's32[1]{0}', space=sflag, size = 0x4, scoped, tag = 'scoped memory for tpu_custom_call.1']
    #allocation4 [shape = 's32[1]{0}', space=sflag, size = 0x4, scoped, tag = 'scoped memory for tpu_custom_call.1']
    #allocation5 [shape = 'u8[8192]{0}', space=vmem, size = 0x2000, scoped, tag = 'output window, operand 0, single buffered']
    %7 = vsyncpa [#allocation3], 0
    %8 = vsyncpa [#allocation4], 0
    // Predicated region
    $region2: #{tpu_custom_call.1} parent=1 // pred_check
      _
    $region3: #{tpu_custom_call.1} parent=1 // pred_check_branch
      %10 = sbr.rel (0) target = $region5
    $region4: #{tpu_custom_call.1} parent=1 // pred_region
      %s12 = ssub.s32 256, 256
      %13 = vsyncadd [#allocation3], %s12
      %s14 = sshll.u32 [#allocation2], 4
      %s15 = int_to_ptr.vmem [resolvable:$true] %s14
      %20 = dma.hbm_to_vmem [thread:$0]  %s0, 256, %s15, [#allocation3], 128, 128, 8
    $region5: #{tpu_custom_call.1} parent=1 // pred_fallthru
      _
    // Predicated region
    $region6: #{tpu_custom_call.1} parent=1 // pred_check
      _
    $region7: #{tpu_custom_call.1} parent=1 // pred_check_branch
      %22 = sbr.rel (0) target = $region9
    $region8: #{tpu_custom_call.1} parent=1 // pred_region
      _
    $region9: #{tpu_custom_call.1} parent=1 // pred_fallthru
      _
    // Predicated region
    $region10: #{tpu_custom_call.1} parent=1 // pred_check
      _
    $region11: #{tpu_custom_call.1} parent=1 // pred_check_branch
      %24 = sbr.rel (0) target = $region13
    $region12: #{tpu_custom_call.1} parent=1 // pred_region
      %25 = dma.done [#allocation3], 256
    $region13: #{tpu_custom_call.1} parent=1 // pred_fallthru
      _
    %v26 = vld [vmem:[#allocation2] sm:$0xff]
    %v27 = vld [vmem:[#allocation2 + $0x8] sm:$0xff]
    %v28 = vmul.f32 %v26, %v26
    %v29 = vmul.f32 %v27, %v27
    %30 = vadd.xlane.f32.xlu0 %v28
    %v31 = vpop.xlane.xlu0 %30
    %32 = vadd.xlane.f32.xlu0 %v29
    %v33 = vpop.xlane.xlu0 %32
    %v34 = vmul.f32 %v31, 0.03125
    %v35 = vmul.f32 %v33, 0.03125
    %v36 = vadd.f32 %v34, 1e-06
    %v37 = vadd.f32 %v35, 1e-06
    %v38 = vrsqrt.pop %v36
    %v39 = vrsqrt.pop %v37
    %v40 = vmul.f32 %v26, %v38
    %v41 = vmul.f32 %v27, %v39
    %v42 = vld [vmem:[%s1] sm:$0x1]
    %v44 = vlaneseq
    %v45 = vshrl.u32 %v44, 7
    %v46 = vsub.s32 0, %v45
    %v47 = vrot.slane %v42, %v46
    %v49 = vmul.f32 %v47, %v40
    %v50 = vmul.f32 %v47, %v41
    %51 = vst [vmem:[#allocation5] sm:$0xff] %v49
    %52 = vst [vmem:[#allocation5 + $0x8] sm:$0xff] %v50
    // Predicated region
    $region14: #{tpu_custom_call.1} parent=1 // pred_check
      _
    $region15: #{tpu_custom_call.1} parent=1 // pred_check_branch
      %54 = sbr.rel (0) target = $region17
    $region16: #{tpu_custom_call.1} parent=1 // pred_region
      %s56 = ssub.s32 256, 256
      %57 = vsyncadd [#allocation4], %s56
      %s58 = sshll.u32 [#allocation5], 4
      %s59 = int_to_ptr.vmem [resolvable:$true] %s58
      %64 = dma.vmem_to_hbm [thread:$0]  %s59, 256, %s2, [#allocation4], 128, 128, 8
    $region17: #{tpu_custom_call.1} parent=1 // pred_fallthru
      _
    // Predicated region
    $region18: #{tpu_custom_call.1} parent=1 // pred_check
      _
    $region19: #{tpu_custom_call.1} parent=1 // pred_check_branch
      %66 = sbr.rel (0) target = $region21
    $region20: #{tpu_custom_call.1} parent=1 // pred_region
      %67 = dma.done [#allocation4], 256
    $region21: #{tpu_custom_call.1} parent=1 // pred_fallthru
      _
    %68 = vsyncpa [#allocation3], 1
    %69 = vsyncpa [#allocation4], 1

</llo_original>
